<compile_context>
chip_gen: v6e
topology: v6e:2x2x1
jax: 0.10.0
libtpu: 0.0.40
codegen_flags: <defaults>
</compile_context>

<pallas_src>
import jax
import jax.numpy as jnp
from jax.experimental import pallas as pl
from jax.experimental.pallas import tpu as pltpu


def _round_up(v, m):
    return ((v + m - 1) // m) * m


def mlp_kernel(x_ref, w1t_ref, w2t_ref, p_ref, o_ref):
    """One batch tile.

    x_ref : (bm, F)            f32  natural [B, F] layout (no wrapper transpose)
    w1t_ref: (H1, F)           bf16 (resident across grid steps)
    w2t_ref: (H2, H1)          bf16 (resident)
    p_ref : (H1 + 2*H2 + 1, 1) f32  packed [b1; b2; w3; b3] (resident)
    o_ref : (1, bm)            f32  lane-dense output row (batch on lanes)
    """
    H1 = w1t_ref.shape[0]
    H2 = w2t_ref.shape[0]
    b1 = p_ref[0:H1, :]                           # (H1, 1)
    b2 = p_ref[H1:H1 + H2, :]                     # (H2, 1)
    w3 = p_ref[H1 + H2:H1 + 2 * H2, :]            # (H2, 1)
    b3 = p_ref[H1 + 2 * H2:H1 + 2 * H2 + 1, :]    # (1, 1)

    # Put batch on the lane axis inside VMEM (f32 XLU transpose, no HBM pass),
    # then cast once to the MXU operand dtype.
    xT = x_ref[...].T.astype(w1t_ref.dtype)       # (F, bm)

    # fc1 + ReLU (dropout = identity in eval mode).  Keep the largest
    # intermediate live only in bf16.
    h1 = jnp.dot(w1t_ref[...], xT, preferred_element_type=jnp.float32)
    h1 = jnp.maximum(h1 + b1, 0.0).astype(w2t_ref.dtype)     # (H1, bm)

    # fc2 + ReLU (dropout = identity in eval mode).
    h2 = jnp.dot(w2t_ref[...], h1, preferred_element_type=jnp.float32)
    h2 = jnp.maximum(h2 + b2, 0.0)                            # (H2, bm) f32

    # fc3: output width 1 -> VPU multiply + sublane (XLU) reduce instead of a
    # 1-column MXU matmul; result is a lane-dense (1, bm) row.
    out = jnp.sum(h2 * w3, axis=0, keepdims=True) + b3
    o_ref[...] = out.astype(o_ref.dtype)


def mlp_forward(x, params, *, bm=4096, use_bf16=True):
    """x: [B, F] float32.  params: dict with w{i}: [in,out], b{i}: [1,out].

    Returns [B, 1] float32 (matching the PyTorch module's output shape).
    """
    B, F = x.shape
    H1 = params["w1"].shape[1]
    H2 = params["w2"].shape[1]
    O = params["w3"].shape[1]          # == 1

    # Batch tile: multiple of 128 (it is the lane dim of the (O, bm) output
    # block), clamped so the grid keeps >= 2 steps when the batch allows it
    # (keeps both v7x TensorCores busy; harmless on v5e/v6e).
    assert bm % 128 == 0, "bm must be a multiple of 128"
    bm_eff = min(bm, max(128, _round_up(pl.cdiv(B, 2), 128)))
    n_tiles = pl.cdiv(B, bm_eff)
    B_pad = n_tiles * bm_eff
    if B_pad != B:
        x = jnp.pad(x, ((0, B_pad - B), (0, 0)))

    wdt = jnp.bfloat16 if use_bf16 else jnp.float32
    # x is passed in its natural [B, F] f32 layout: no extra transpose / cast
    # pass through HBM.  Only the tiny weights are pre-cast (negligible).
    w1t = params["w1"].T.astype(wdt)                 # (H1, F)
    w2t = params["w2"].T.astype(wdt)                 # (H2, H1)
    packed = jnp.concatenate([
        params["b1"].reshape(H1, 1),
        params["b2"].reshape(H2, 1),
        params["w3"].reshape(H2, O),
        params["b3"].reshape(O, 1),
    ], axis=0).astype(jnp.float32)                   # (H1 + 2*H2 + 1, 1)
    P = packed.shape[0]

    flops = 2 * B_pad * (F * H1 + H1 * H2 + H2 * O)
    bytes_accessed = (B_pad * F * 4 + B_pad * O * 4
                      + (w1t.size + w2t.size) * w1t.dtype.itemsize + P * 4)

    # Scoped-VMEM estimate: double-buffered x/out tiles + f32/bf16 activations.
    # Only override the default when a big bm sweep actually needs it
    # (v5e scoped default is 16 MiB; v7x physical VMEM is only 64 MiB).
    per_elem = 2 * 4 * F + 2 * 4 + 4 * H1 + 2 * H1 + 4 * H2
    est_vmem = bm_eff * per_elem + 4 * (H1 * F + H2 * H1 + P)
    vmem_limit = None
    if est_vmem > 12 * 1024 * 1024:
        vmem_limit = min(int(est_vmem * 3 // 2), 60 * 1024 * 1024)

    out = pl.pallas_call(
        mlp_kernel,
        out_shape=jax.ShapeDtypeStruct((O, B_pad), jnp.float32),
        grid_spec=pltpu.PrefetchScalarGridSpec(
            num_scalar_prefetch=0,
            grid=(n_tiles,),
            in_specs=[
                pl.BlockSpec((bm_eff, F), lambda i: (i, 0)),   # x tile (natural layout)
                pl.BlockSpec((H1, F), lambda i: (0, 0)),       # w1^T (resident)
                pl.BlockSpec((H2, H1), lambda i: (0, 0)),      # w2^T (resident)
                pl.BlockSpec((P, 1), lambda i: (0, 0)),        # packed b1/b2/w3/b3
            ],
            out_specs=pl.BlockSpec((O, bm_eff), lambda i: (0, i)),  # lane-dense row
        ),
        compiler_params=pltpu.CompilerParams(
            dimension_semantics=("parallel",),
            vmem_limit_bytes=vmem_limit),
        cost_estimate=pl.CostEstimate(
            flops=flops, transcendentals=0, bytes_accessed=bytes_accessed),
    )(x, w1t, w2t, packed)

    # Back to the PyTorch-style [B, 1] output; drop batch padding.
    return out[0, :B].reshape(B, 1)


def init_params(key, in_features):
    """Deterministic init mimicking PyTorch's default Linear init
    (uniform in +-1/sqrt(fan_in)), weights stored as [in, out]."""
    dims = [(in_features, 64), (64, 32), (32, 1)]
    params = {}
    for idx, (fan_in, fan_out) in enumerate(dims, start=1):
        key, kw, kb = jax.random.split(key, 3)
        bound = 1.0 / jnp.sqrt(float(fan_in))
        params[f"w{idx}"] = jax.random.uniform(
            kw, (fan_in, fan_out), jnp.float32, minval=-bound, maxval=bound)
        params[f"b{idx}"] = jax.random.uniform(
            kb, (1, fan_out), jnp.float32, minval=-bound, maxval=bound)
    return params


def mlp_reference(x, params, *, use_bf16=True):
    """Pure-JAX reference with the same bf16 quantization points as the kernel."""
    def q(a):
        return a.astype(jnp.bfloat16).astype(jnp.float32) if use_bf16 else a
    h1 = jnp.maximum(q(x) @ q(params["w1"]) + params["b1"], 0.0)
    h2 = jnp.maximum(q(h1) @ q(params["w2"]) + params["b2"], 0.0)
    return h2 @ params["w3"] + params["b3"]


if __name__ == "__main__":
    key = jax.random.PRNGKey(0)
    k_x, k_p, k_x2 = jax.random.split(key, 3)

    F = 16  # X_train.shape[1] chosen as 16
    params = init_params(k_p, F)

    # Case 1: batch a multiple of 128 -> tile is clamped to B/2, 2 parallel steps.
    B1 = 512
    x1 = jax.random.normal(k_x, (B1, F), jnp.float32)
    out1 = jax.block_until_ready(mlp_forward(x1, params))
    ref1 = mlp_reference(x1, params)
    assert out1.shape == (B1, 1)
    assert jnp.allclose(out1, ref1, atol=2e-2, rtol=2e-2)

    # Case 2: ragged batch (exercises the padding path).
    B2 = 200
    x2 = jax.random.normal(k_x2, (B2, F), jnp.float32)
    out2 = jax.block_until_ready(mlp_forward(x2, params))
    ref2 = mlp_reference(x2, params)
    assert out2.shape == (B2, 1)
    assert jnp.allclose(out2, ref2, atol=2e-2, rtol=2e-2)

    print("KERNEL_OK")
</pallas_src>

<mosaic_0001>
module attributes {stable_mosaic.version = 11 : i64} {
  func.func @mlp_kernel(%arg0: i32, %arg1: memref<256x16xf32, #tpu.memory_space<vmem>>, %arg2: memref<64x16xbf16, #tpu.memory_space<vmem>>, %arg3: memref<32x64xbf16, #tpu.memory_space<vmem>>, %arg4: memref<129x1xf32, #tpu.memory_space<vmem>>, %arg5: memref<1x256xf32, #tpu.memory_space<vmem>>) attributes {dimension_semantics = [#tpu.dimension_semantics<parallel>], iteration_bounds = array<i64: 2>, scalar_prefetch = 0 : i64, scratch_operands = 0 : i64, tpu.core_type = #tpu.core_type<tc>, window_params = [{transform_indices = @transform_0, window_bounds = array<i64: 256, 16>}, {pipeline_mode = #tpu.pipeline_mode<synchronous>, transform_indices = @transform_1, window_bounds = array<i64: 64, 16>}, {pipeline_mode = #tpu.pipeline_mode<synchronous>, transform_indices = @transform_2, window_bounds = array<i64: 32, 64>}, {pipeline_mode = #tpu.pipeline_mode<synchronous>, transform_indices = @transform_3, window_bounds = array<i64: 129, 1>}, {transform_indices = @transform_4, window_bounds = array<i64: 1, 256>}]} {
    %c0 = arith.constant 0 : index
    %c0_0 = arith.constant 0 : index
    %0 = vector.load %arg4[%c0, %c0_0] : memref<129x1xf32, #tpu.memory_space<vmem>>, vector<64x1xf32>
    %c64 = arith.constant 64 : index
    %c0_1 = arith.constant 0 : index
    %1 = vector.load %arg4[%c64, %c0_1] : memref<129x1xf32, #tpu.memory_space<vmem>>, vector<32x1xf32>
    %c96 = arith.constant 96 : index
    %c0_2 = arith.constant 0 : index
    %2 = vector.load %arg4[%c96, %c0_2] : memref<129x1xf32, #tpu.memory_space<vmem>>, vector<32x1xf32>
    %c128 = arith.constant 128 : index
    %c0_3 = arith.constant 0 : index
    %3 = vector.load %arg4[%c128, %c0_3] : memref<129x1xf32, #tpu.memory_space<vmem>>, vector<1x1xf32>
    %c0_4 = arith.constant 0 : index
    %c0_5 = arith.constant 0 : index
    %4 = vector.load %arg1[%c0_4, %c0_5] : memref<256x16xf32, #tpu.memory_space<vmem>>, vector<256x16xf32>
    %5 = tpu.transpose %4, [1, 0] : vector<256x16xf32> -> vector<16x256xf32>
    %6 = arith.truncf %5 : vector<16x256xf32> to vector<16x256xbf16>
    %c0_6 = arith.constant 0 : index
    %c0_7 = arith.constant 0 : index
    %7 = vector.load %arg2[%c0_6, %c0_7] : memref<64x16xbf16, #tpu.memory_space<vmem>>, vector<64x16xbf16>
    %cst = arith.constant dense<0.000000e+00> : vector<64x256xf32>
    %8 = tpu.matmul %7, %6, %cst {dimension_numbers = #tpu.dot_dimension_numbers<[1], [0], [0], [1], [0, 0, 1, 1], [], []>} : vector<64x16xbf16>, vector<16x256xbf16>, vector<64x256xf32> -> vector<64x256xf32>
    %9 = vector.broadcast %0 : vector<64x1xf32> to vector<64x256xf32>
    %10 = arith.addf %8, %9 : vector<64x256xf32>
    %cst_8 = arith.constant 0.000000e+00 : f32
    %11 = vector.broadcast %cst_8 : f32 to vector<64x256xf32>
    %12 = arith.maximumf %10, %11 : vector<64x256xf32>
    %13 = arith.truncf %12 : vector<64x256xf32> to vector<64x256xbf16>
    %c0_9 = arith.constant 0 : index
    %c0_10 = arith.constant 0 : index
    %14 = vector.load %arg3[%c0_9, %c0_10] : memref<32x64xbf16, #tpu.memory_space<vmem>>, vector<32x64xbf16>
    %cst_11 = arith.constant dense<0.000000e+00> : vector<32x256xf32>
    %15 = tpu.matmul %14, %13, %cst_11 {dimension_numbers = #tpu.dot_dimension_numbers<[1], [0], [0], [1], [0, 0, 1, 1], [], []>} : vector<32x64xbf16>, vector<64x256xbf16>, vector<32x256xf32> -> vector<32x256xf32>
    %16 = vector.broadcast %1 : vector<32x1xf32> to vector<32x256xf32>
    %17 = arith.addf %15, %16 : vector<32x256xf32>
    %cst_12 = arith.constant 0.000000e+00 : f32
    %18 = vector.broadcast %cst_12 : f32 to vector<32x256xf32>
    %19 = arith.maximumf %17, %18 : vector<32x256xf32>
    %20 = vector.broadcast %2 : vector<32x1xf32> to vector<32x256xf32>
    %21 = arith.mulf %19, %20 : vector<32x256xf32>
    %cst_13 = arith.constant dense<0.000000e+00> : vector<256xf32>
    %22 = vector.multi_reduction <add>, %21, %cst_13 [0] : vector<32x256xf32> to vector<256xf32>
    %23 = vector.shape_cast %22 : vector<256xf32> to vector<1x256xf32>
    %24 = vector.broadcast %3 : vector<1x1xf32> to vector<1x256xf32>
    %25 = arith.addf %23, %24 : vector<1x256xf32>
    %c0_14 = arith.constant 0 : index
    %c0_15 = arith.constant 0 : index
    %26 = vector.load %arg5[%c0_14, %c0_15] : memref<1x256xf32, #tpu.memory_space<vmem>>, vector<1x256xf32>
    tpu.vector_store %arg5[%c0_14, %c0_15], %25 {strides = array<i32>} : memref<1x256xf32, #tpu.memory_space<vmem>>, vector<1x256xf32>,
    return
  }
  func.func @transform_0(%arg0: i32) -> (i32, i32) {
    %c0_i32 = arith.constant 0 : i32
    %c0_i32_0 = arith.constant 0 : i32
    return %arg0, %c0_i32 : i32, i32
  }
  func.func @transform_1(%arg0: i32) -> (i32, i32) {
    %c0_i32 = arith.constant 0 : i32
    %c0_i32_0 = arith.constant 0 : i32
    %c0_i32_1 = arith.constant 0 : i32
    return %c0_i32, %c0_i32_0 : i32, i32
  }
  func.func @transform_2(%arg0: i32) -> (i32, i32) {
    %c0_i32 = arith.constant 0 : i32
    %c0_i32_0 = arith.constant 0 : i32
    %c0_i32_1 = arith.constant 0 : i32
    return %c0_i32, %c0_i32_0 : i32, i32
  }
  func.func @transform_3(%arg0: i32) -> (i32, i32) {
    %c0_i32 = arith.constant 0 : i32
    %c0_i32_0 = arith.constant 0 : i32
    %c0_i32_1 = arith.constant 0 : i32
    return %c0_i32, %c0_i32_0 : i32, i32
  }
  func.func @transform_4(%arg0: i32) -> (i32, i32) {
    %c0_i32 = arith.constant 0 : i32
    %c0_i32_0 = arith.constant 0 : i32
    return %c0_i32, %arg0 : i32, i32
  }
}

</mosaic_0001>

<llo_original>
// kernel: tpu_custom_call.1
$region0: #{tpu_custom_call.1}
  #allocation0 [shape = 'u32[]', space=smem, size = 0x4, offset = 0x4, fixed_abs, tag = 'smem constant byte address 0x4 - core index']
  #allocation1 [shape = 'u32[144,128]{1,0:T(1,128)}', space=vmem, size = 0x12000, scoped, tag = 'internal scratch']
  %s0 = inlined_call_operand.vmem [shape: f32[512,16], index: 0, kind: input, shape index: {}]
  %s1 = inlined_call_operand.vmem [shape: bf16[64,16], index: 1, kind: input, shape index: {}]
  %s2 = inlined_call_operand.vmem [shape: bf16[32,64], index: 2, kind: input, shape index: {}]
  %s3 = inlined_call_operand.vmem [shape: f32[129,1], index: 3, kind: input, shape index: {}]
  %s4 = inlined_call_operand.hbm [shape: f32[1,512], index: 4, kind: output, shape index: {}]
  %s5 = sld [smem:[#allocation0]]
  $region49: #{tpu_custom_call.1} parent=0
    _
  %s7 = ssub.s32 1, %s5
  %s8 = scalar_select 0, %s7, %s5
  $region1: #{tpu_custom_call.1} parent=0
    #allocation2 [shape = 'u8[2048]{0}', space=vmem, size = 0x800, scoped, tag = 'output window, operand 0']
    #allocation3 [shape = 's32[2]{0}', space=sflag, size = 0x8, scoped, tag = 'scoped memory for tpu_custom_call.1']
    %9 = vsyncpa [#allocation3], 0
    %s10 = scalar_lea.sflag [#allocation3], 1
    %11 = vsyncpa %s10, 0
    loop: start=0, step=1, limit=4
    $region2: #{tpu_custom_call.1} parent=1 // loop_pre_header
      _
    $region3: #{tpu_custom_call.1} parent=1 // loop_header
      %s13 = sphi 0, %s17
      %p14 = scmp.ge.s32.totalorder %s13, 4
      %s23 = sphi 0, %s25
      %s26 = sphi 0, %s23
      %s27 = sphi 0, %s26
      %s43 = sphi 0, %s27
      %s47 = sphi 0, %s47
      %s49 = sphi 0, %s47
      %s50 = sphi 0, %s49
      %s64 = sphi 0, %s50
      %s68 = sphi 0, %s68
      %s70 = sphi 0, %s68
      %s71 = sphi 0, %s70
      %s85 = sphi 0, %s71
      %s89 = sphi 0, %s89
      %s91 = sphi 0, %s89
      %s92 = sphi 0, %s91
      %s106 = sphi 0, %s92
      %s112 = sphi 0, %s114
      %s115 = sphi 0, %s112
      %s116 = sphi 0, %s115
      %s132 = sphi 0, %s116
    $region4: #{tpu_custom_call.1} parent=1 // loop_header_branch
      %16 = sbr.rel (%p14) target = $region8
    $region5: #{tpu_custom_call.1} parent=1 // loop_body
      %s18 = ssub.s32 %s13, 1
      %s19 = ssub.s32 %s13, 2
      %s20 = sadd.s32 %s13, 1
      %s21 = ssub.s32 %s13, %s20
      %p22 = scmp.eq.s32.totalorder %s21, 0
      %s24 = sadd.s32 %s23, 1
      %s25 = scalar_select %p22, %s23, %s24
      %p28 = pneg %p22
      %p29 = scmp.eq.s32.totalorder %s13, 1
      %p30 = por %p28, %p29
      %p31 = scmp.ne.s32.totalorder %s23, %s26
      %p32 = scmp.eq.s32.totalorder %s13, 0
      %p33 = por %p31, %p32
      %p34 = scmp.ne.s32.totalorder %s23, %s26
      %p35 = scmp.eq.s32.totalorder %s18, 1
      %p36 = por %p34, %p35
      %p37 = scmp.ne.s32.totalorder %s26, %s27
      %p38 = scmp.eq.s32.totalorder %s18, 0
      %p39 = por %p37, %p38
      %p40 = scmp.ne.s32.totalorder %s26, %s27
      %p41 = scmp.eq.s32.totalorder %s19, 1
      %p42 = por %p40, %p41
      %p44 = scmp.ne.s32.totalorder %s27, %s43
      %p45 = scmp.eq.s32.totalorder %s19, 0
      %p46 = por %p44, %p45
      %s48 = sadd.s32 %s47, 1
      %p51 = scmp.eq.s32.totalorder %s13, 1
      %p52 = scmp.ne.s32.totalorder %s47, %s49
      %p53 = scmp.eq.s32.totalorder %s13, 0
      %p54 = por %p52, %p53
      %p55 = scmp.ne.s32.totalorder %s47, %s49
      %p56 = scmp.eq.s32.totalorder %s18, 1
      %p57 = por %p55, %p56
      %p58 = scmp.ne.s32.totalorder %s49, %s50
      %p59 = scmp.eq.s32.totalorder %s18, 0
      %p60 = por %p58, %p59
      %p61 = scmp.ne.s32.totalorder %s49, %s50
      %p62 = scmp.eq.s32.totalorder %s19, 1
      %p63 = por %p61, %p62
      %p65 = scmp.ne.s32.totalorder %s50, %s64
      %p66 = scmp.eq.s32.totalorder %s19, 0
      %p67 = por %p65, %p66
      %s69 = sadd.s32 %s68, 1
      %p72 = scmp.eq.s32.totalorder %s13, 1
      %p73 = scmp.ne.s32.totalorder %s68, %s70
      %p74 = scmp.eq.s32.totalorder %s13, 0
      %p75 = por %p73, %p74
      %p76 = scmp.ne.s32.totalorder %s68, %s70
      %p77 = scmp.eq.s32.totalorder %s18, 1
      %p78 = por %p76, %p77
      %p79 = scmp.ne.s32.totalorder %s70, %s71
      %p80 = scmp.eq.s32.totalorder %s18, 0
      %p81 = por %p79, %p80
      %p82 = scmp.ne.s32.totalorder %s70, %s71
      %p83 = scmp.eq.s32.totalorder %s19, 1
      %p84 = por %p82, %p83
      %p86 = scmp.ne.s32.totalorder %s71, %s85
      %p87 = scmp.eq.s32.totalorder %s19, 0
      %p88 = por %p86, %p87
      %s90 = sadd.s32 %s89, 1
      %p93 = scmp.eq.s32.totalorder %s13, 1
      %p94 = scmp.ne.s32.totalorder %s89, %s91
      %p95 = scmp.eq.s32.totalorder %s13, 0
      %p96 = por %p94, %p95
      %p97 = scmp.ne.s32.totalorder %s89, %s91
      %p98 = scmp.eq.s32.totalorder %s18, 1
      %p99 = por %p97, %p98
      %p100 = scmp.ne.s32.totalorder %s91, %s92
      %p101 = scmp.eq.s32.totalorder %s18, 0
      %p102 = por %p100, %p101
      %p103 = scmp.ne.s32.totalorder %s91, %s92
      %p104 = scmp.eq.s32.totalorder %s19, 1
      %p105 = por %p103, %p104
      %p107 = scmp.ne.s32.totalorder %s92, %s106
      %p108 = scmp.eq.s32.totalorder %s19, 0
      %p109 = por %p107, %p108
      %s110 = ssub.s32 %s13, %s20
      %p111 = scmp.eq.s32.totalorder %s110, 0
      %s113 = sadd.s32 %s112, 1
      %s114 = scalar_select %p111, %s112, %s113
      %p117 = pneg %p111
      %p118 = scmp.eq.s32.totalorder %s13, 1
      %p119 = por %p117, %p118
      %p120 = scmp.ne.s32.totalorder %s112, %s115
      %p121 = scmp.eq.s32.totalorder %s13, 0
      %p122 = por %p120, %p121
      %p123 = scmp.ne.s32.totalorder %s112, %s115
      %p124 = scmp.eq.s32.totalorder %s18, 1
      %p125 = por %p123, %p124
      %p126 = scmp.ne.s32.totalorder %s115, %s116
      %p127 = scmp.eq.s32.totalorder %s18, 0
      %p128 = por %p126, %p127
      %p129 = scmp.ne.s32.totalorder %s115, %s116
      %p130 = scmp.eq.s32.totalorder %s19, 1
      %p131 = por %p129, %p130
      %p133 = scmp.ne.s32.totalorder %s116, %s132
      %p134 = scmp.eq.s32.totalorder %s19, 0
      %p135 = por %p133, %p134
      %p136 = scmp.le.s32.totalorder 1, %s13
      %p137 = scmp.lt.s32.totalorder %s13, 3
      %p138 = pnand %p136, %p137
      %p139 = pneg %p138
      // Predicated region
      $region9: #{tpu_custom_call.1} parent=5 // pred_check
        _
      $region10: #{tpu_custom_call.1} parent=5 // pred_check_branch
        %141 = sbr.rel (%p138) target = $region12
      $region11: #{tpu_custom_call.1} parent=5 // pred_region
        %s142 = ssub.s32 %s13, 1
        // Predicated region
        $region13: #{tpu_custom_call.1} parent=11 // pred_check
          %p143 = pneg %p60
        $region14: #{tpu_custom_call.1} parent=11 // pred_check_branch
          %145 = sbr.rel (%p143) target = $region16
        $region15: #{tpu_custom_call.1} parent=11 // pred_region
          _
        $region16: #{tpu_custom_call.1} parent=11 // pred_fallthru
          _
        // Predicated region
        $region17: #{tpu_custom_call.1} parent=11 // pred_check
          %p146 = pneg %p81
        $region18: #{tpu_custom_call.1} parent=11 // pred_check_branch
          %148 = sbr.rel (%p146) target = $region20
        $region19: #{tpu_custom_call.1} parent=11 // pred_region
          _
        $region20: #{tpu_custom_call.1} parent=11 // pred_fallthru
          _
        // Predicated region
        $region21: #{tpu_custom_call.1} parent=11 // pred_check
          %p149 = pneg %p102
        $region22: #{tpu_custom_call.1} parent=11 // pred_check_branch
          %151 = sbr.rel (%p149) target = $region24
        $region23: #{tpu_custom_call.1} parent=11 // pred_region
          _
        $region24: #{tpu_custom_call.1} parent=11 // pred_fallthru
          _
      $region12: #{tpu_custom_call.1} parent=5 // pred_fallthru
        _
      %p152 = scmp.lt.s32.totalorder %s13, 2
      // Predicated region
      $region25: #{tpu_custom_call.1} parent=5 // pred_check
        %p153 = pneg %p152
      $region26: #{tpu_custom_call.1} parent=5 // pred_check_branch
        %155 = sbr.rel (%p153) target = $region28
      $region27: #{tpu_custom_call.1} parent=5 // pred_region
        // Predicated region
        $region29: #{tpu_custom_call.1} parent=27 // pred_check
          %p156 = pneg %p33
        $region30: #{tpu_custom_call.1} parent=27 // pred_check_branch
          %158 = sbr.rel (%p156) target = $region32
        $region31: #{tpu_custom_call.1} parent=27 // pred_region
          %s159 = smul.u32 32, %s13
          %p160 = scmp.lt.s32.totalorder %s159, 63
          %s161 = scalar_select %p160, %s159, 63
          %s162 = smul.addr %s161, 8
          %s163 = scalar_lea.vmem %s0, %s162
          %s164 = smul.u32 32, %s13
        $region32: #{tpu_custom_call.1} parent=27 // pred_fallthru
          _
      $region28: #{tpu_custom_call.1} parent=5 // pred_fallthru
        _
      %p165 = scmp.le.s32.totalorder 1, %s13
      %p166 = scmp.lt.s32.totalorder %s13, 3
      %p167 = pnand %p165, %p166
      %p168 = pneg %p167
      // Predicated region
      $region33: #{tpu_custom_call.1} parent=5 // pred_check
        _
      $region34: #{tpu_custom_call.1} parent=5 // pred_check_branch
        %170 = sbr.rel (%p167) target = $region36
      $region35: #{tpu_custom_call.1} parent=5 // pred_region
        %s171 = ssub.s32 %s13, 1
        %s172 = smul.u32 32, %s18
        %p173 = scmp.lt.s32.totalorder %s172, 63
        %s174 = scalar_select %p173, %s172, 63
        %s175 = smul.addr %s174, 8
        %s176 = scalar_lea.vmem %s0, %s175
        %p177 = pneg %p39
        %p178 = pneg %p36
        %p179 = pneg %p60
        %p180 = pneg %p57
        %p181 = pneg %p81
        %p182 = pneg %p78
        %p183 = pneg %p102
        %p184 = pneg %p99
        %p185 = pneg %p128
        %p186 = pneg %p125
        %s187 = sand.u32 %s115, 1
        %s188 = scalar_lea.sflag [#allocation3], %s187
        %s189 = sand.u32 %s115, 1
        %s190 = smul.addr %s189, 2
        %s191 = scalar_lea.vmem [#allocation2], %s190
        %s192 = smul.u32 32, %s18
        %p193 = scmp.lt.s32.totalorder %s192, 63
        %s194 = scalar_select %p193, %s192, 63
        %s195 = smul.addr %s194, 8
        %s196 = scalar_lea.vmem %s0, %s195
        %s197 = smul.u32 32, %s18
        %s198 = smul.u32 2, %s18
        %v200 = vld [vmem:[%s3] sm:$0xff]
        %v201 = vld [vmem:[%s3 + $0x8] sm:$0xff]
        %v202 = vld [vmem:[%s3 + $0x10] sm:$0xff]
        %v203 = vld [vmem:[%s3 + $0x18] sm:$0xff]
        %v204 = vld [vmem:[%s3 + $0x20] sm:$0xff]
        %v205 = vld [vmem:[%s3 + $0x28] sm:$0xff]
        %v206 = vld [vmem:[%s3 + $0x30] sm:$0xff]
        %v207 = vld [vmem:[%s3 + $0x38] sm:$0xff]
        %v208 = vld [vmem:[%s3 + $0x40] sm:$0xff]
        %v209 = vld [vmem:[%s3 + $0x48] sm:$0xff]
        %v210 = vld [vmem:[%s3 + $0x50] sm:$0xff]
        %v211 = vld [vmem:[%s3 + $0x58] sm:$0xff]
        %v212 = vld [vmem:[%s3 + $0x60] sm:$0xff]
        %v213 = vld [vmem:[%s3 + $0x68] sm:$0xff]
        %v214 = vld [vmem:[%s3 + $0x70] sm:$0xff]
        %v215 = vld [vmem:[%s3 + $0x78] sm:$0xff]
        %v216 = vld [vmem:[%s3 + $0x80] sm:$0x1]
        %v217 = vld [vmem:[%s196] sm:$0xff]
        %v218 = vld [vmem:[%s196 + $0x8] sm:$0xff]
        %v219 = vld [vmem:[%s196 + $0x10] sm:$0xff]
        %v220 = vld [vmem:[%s196 + $0x18] sm:$0xff]
        %v221 = vld [vmem:[%s196 + $0x20] sm:$0xff]
        %v222 = vld [vmem:[%s196 + $0x28] sm:$0xff]
        %v223 = vld [vmem:[%s196 + $0x30] sm:$0xff]
        %v224 = vld [vmem:[%s196 + $0x38] sm:$0xff]
        %v225 = vld [vmem:[%s196 + $0x40] sm:$0xff]
        %v226 = vld [vmem:[%s196 + $0x48] sm:$0xff]
        %v227 = vld [vmem:[%s196 + $0x50] sm:$0xff]
        %v228 = vld [vmem:[%s196 + $0x58] sm:$0xff]
        %v229 = vld [vmem:[%s196 + $0x60] sm:$0xff]
        %v230 = vld [vmem:[%s196 + $0x68] sm:$0xff]
        %v231 = vld [vmem:[%s196 + $0x70] sm:$0xff]
        %v232 = vld [vmem:[%s196 + $0x78] sm:$0xff]
        %v233 = vld [vmem:[%s196 + $0x80] sm:$0xff]
        %v234 = vld [vmem:[%s196 + $0x88] sm:$0xff]
        %v235 = vld [vmem:[%s196 + $0x90] sm:$0xff]
        %v236 = vld [vmem:[%s196 + $0x98] sm:$0xff]
        %v237 = vld [vmem:[%s196 + $0xa0] sm:$0xff]
        %v238 = vld [vmem:[%s196 + $0xa8] sm:$0xff]
        %v239 = vld [vmem:[%s196 + $0xb0] sm:$0xff]
        %v240 = vld [vmem:[%s196 + $0xb8] sm:$0xff]
        %v241 = vld [vmem:[%s196 + $0xc0] sm:$0xff]
        %v242 = vld [vmem:[%s196 + $0xc8] sm:$0xff]
        %v243 = vld [vmem:[%s196 + $0xd0] sm:$0xff]
        %v244 = vld [vmem:[%s196 + $0xd8] sm:$0xff]
        %v245 = vld [vmem:[%s196 + $0xe0] sm:$0xff]
        %v246 = vld [vmem:[%s196 + $0xe8] sm:$0xff]
        %v247 = vld [vmem:[%s196 + $0xf0] sm:$0xff]
        %v248 = vld [vmem:[%s196 + $0xf8] sm:$0xff]
        %249 = vxpose.xlu0.b32.start [1/16] %v217, 128
        %250 = vxpose.xlu0.b32.cont [2/16] %v218, 128
        %251 = vxpose.xlu0.b32.cont [3/16] %v219, 128
        %252 = vxpose.xlu0.b32.cont [4/16] %v220, 128
        %253 = vxpose.xlu0.b32.cont [5/16] %v221, 128
        %254 = vxpose.xlu0.b32.cont [6/16] %v222, 128
        %255 = vxpose.xlu0.b32.cont [7/16] %v223, 128
        %256 = vxpose.xlu0.b32.cont [8/16] %v224, 128
        %257 = vxpose.xlu0.b32.cont [9/16] %v225, 128
        %258 = vxpose.xlu0.b32.cont [10/16] %v226, 128
        %259 = vxpose.xlu0.b32.cont [11/16] %v227, 128
        %260 = vxpose.xlu0.b32.cont [12/16] %v228, 128
        %261 = vxpose.xlu0.b32.cont [13/16] %v229, 128
        %262 = vxpose.xlu0.b32.cont [14/16] %v230, 128
        %263 = vxpose.xlu0.b32.cont [15/16] %v231, 128
        %264 = vxpose.xlu0.b32.end [16/16] %v232, 128
        %v265 = vpop.trf.xlu0
        %v266 = vpop.trf.xlu0
        %v267 = vpop.trf.xlu0
        %v268 = vpop.trf.xlu0
        %v269 = vpop.trf.xlu0
        %v270 = vpop.trf.xlu0
        %v271 = vpop.trf.xlu0
        %v272 = vpop.trf.xlu0
        %v273 = vpop.trf.xlu0
        %v274 = vpop.trf.xlu0
        %v275 = vpop.trf.xlu0
        %v276 = vpop.trf.xlu0
        %v277 = vpop.trf.xlu0
        %v278 = vpop.trf.xlu0
        %v279 = vpop.trf.xlu0
        %v280 = vpop.trf.xlu0
        %281 = vxpose.xlu0.b32.start [1/16] %v233, 128
        %282 = vxpose.xlu0.b32.cont [2/16] %v234, 128
        %283 = vxpose.xlu0.b32.cont [3/16] %v235, 128
        %284 = vxpose.xlu0.b32.cont [4/16] %v236, 128
        %285 = vxpose.xlu0.b32.cont [5/16] %v237, 128
        %286 = vxpose.xlu0.b32.cont [6/16] %v238, 128
        %287 = vxpose.xlu0.b32.cont [7/16] %v239, 128
        %288 = vxpose.xlu0.b32.cont [8/16] %v240, 128
        %289 = vxpose.xlu0.b32.cont [9/16] %v241, 128
        %290 = vxpose.xlu0.b32.cont [10/16] %v242, 128
        %291 = vxpose.xlu0.b32.cont [11/16] %v243, 128
        %292 = vxpose.xlu0.b32.cont [12/16] %v244, 128
        %293 = vxpose.xlu0.b32.cont [13/16] %v245, 128
        %294 = vxpose.xlu0.b32.cont [14/16] %v246, 128
        %295 = vxpose.xlu0.b32.cont [15/16] %v247, 128
        %296 = vxpose.xlu0.b32.end [16/16] %v248, 128
        %v297 = vpop.trf.xlu0
        %v298 = vpop.trf.xlu0
        %v299 = vpop.trf.xlu0
        %v300 = vpop.trf.xlu0
        %v301 = vpop.trf.xlu0
        %v302 = vpop.trf.xlu0
        %v303 = vpop.trf.xlu0
        %v304 = vpop.trf.xlu0
        %v305 = vpop.trf.xlu0
        %v306 = vpop.trf.xlu0
        %v307 = vpop.trf.xlu0
        %v308 = vpop.trf.xlu0
        %v309 = vpop.trf.xlu0
        %v310 = vpop.trf.xlu0
        %v311 = vpop.trf.xlu0
        %v312 = vpop.trf.xlu0
        %v313 = vpack.c.bf16 %v266, %v265
        %v314 = vpack.c.bf16 %v298, %v297
        %v315 = vld [vmem:[%s1] sm:$0xf]
        %v316 = vld [vmem:[%s1 + $0x4] sm:$0xf]
        %v317 = vld [vmem:[%s1 + $0x8] sm:$0xf]
        %v318 = vld [vmem:[%s1 + $0xc] sm:$0xf]
        %v319 = vld [vmem:[%s1 + $0x10] sm:$0xf]
        %v320 = vld [vmem:[%s1 + $0x14] sm:$0xf]
        %v321 = vld [vmem:[%s1 + $0x18] sm:$0xf]
        %v322 = vld [vmem:[%s1 + $0x1c] sm:$0xf]
        %324 = vset.pattern.permute.xlu0 0
        %325 = vperm.xlu0 %324, %v200
        %v326 = vpop.permute.xlu0 %325
        %329 = vset.pattern.permute.xlu0 0
        %330 = vperm.xlu0 %329, %v201
        %v331 = vpop.permute.xlu0 %330
        %334 = vset.pattern.permute.xlu0 0
        %335 = vperm.xlu0 %334, %v202
        %v336 = vpop.permute.xlu0 %335
        %339 = vset.pattern.permute.xlu0 0
        %340 = vperm.xlu0 %339, %v203
        %v341 = vpop.permute.xlu0 %340
        %344 = vset.pattern.permute.xlu0 0
        %345 = vperm.xlu0 %344, %v204
        %v346 = vpop.permute.xlu0 %345
        %349 = vset.pattern.permute.xlu0 0
        %350 = vperm.xlu0 %349, %v205
        %v351 = vpop.permute.xlu0 %350
        %354 = vset.pattern.permute.xlu0 0
        %355 = vperm.xlu0 %354, %v206
        %v356 = vpop.permute.xlu0 %355
        %359 = vset.pattern.permute.xlu0 0
        %360 = vperm.xlu0 %359, %v207
        %v361 = vpop.permute.xlu0 %360
        %v371 = vunpack.c.l.b16 %v315
        %v372 = vunpack.c.l.b16 %v316
        %v373 = vunpack.c.l.b16 %v317
        %v374 = vunpack.c.l.b16 %v318
        %v375 = vunpack.c.l.b16 %v319
        %v376 = vunpack.c.l.b16 %v320
        %v377 = vunpack.c.l.b16 %v321
        %v378 = vunpack.c.l.b16 %v322
        %v379 = vpack.c.b16 %v372, %v371
        %v380 = vpack.c.b16 %v374, %v373
        %v381 = vpack.c.b16 %v376, %v375
        %v382 = vpack.c.b16 %v378, %v377
        %vm383 = vcmask 130048
        %v385 = vsel %vm383, %v379, 0
        %v388 = vsel %vm383, %v380, 0
        %v391 = vsel %vm383, %v381, 0
        %v394 = vsel %vm383, %v382, 0
        %396 = vmatprep.subr.bf16.mxu0 0
        %397 = vmatpush1.bf16.msra.mxu0 0
        %398 = vmatprep.subr.bf16.mxu0 0
        %399 = vmatpush1.bf16.msra.mxu0 0
        %400 = vmatprep.subr.bf16.mxu0 0
        %401 = vmatpush1.bf16.msra.mxu0 0
        %402 = vmatprep.subr.bf16.mxu0 0
        %403 = vmatpush1.bf16.msra.mxu0 0
        %404 = vmatprep.subr.bf16.mxu0 0
        %405 = vmatpush1.bf16.msra.mxu0 0
        %406 = vmatprep.subr.bf16.mxu0 0
        %407 = vmatpush1.bf16.msra.mxu0 0
        %408 = vmatprep.subr.bf16.mxu0 0
        %409 = vmatpush1.bf16.msra.mxu0 0
        %410 = vmatprep.subr.bf16.mxu0 %v314
        %411 = vmatpush1.bf16.msra.mxu0 %v313
        %412 = vmatprep.subr.bf16.mxu0 0
        %413 = vmatpush2.bf16.msra.mxu0 0
        %414 = vmatprep.subr.bf16.mxu0 0
        %415 = vmatpush2.bf16.msra.mxu0 0
        %416 = vmatprep.subr.bf16.mxu0 0
        %417 = vmatpush2.bf16.msra.mxu0 0
        %418 = vmatprep.subr.bf16.mxu0 0
        %419 = vmatpush2.bf16.msra.mxu0 0
        %420 = vmatprep.subr.bf16.mxu0 0
        %421 = vmatpush2.bf16.msra.mxu0 0
        %422 = vmatprep.subr.bf16.mxu0 0
        %423 = vmatpush2.bf16.msra.mxu0 0
        %424 = vmatprep.subr.bf16.mxu0 0
        %425 = vmatpush2.bf16.msra.mxu0 0
        %426 = vmatprep.subr.bf16.mxu0 0
        %427 = vmatpush2.bf16.msra.mxu0 0
        %428 = vmatprep.mubr.bf16.mxu0 0
        %429 = vmatmul.mubr.bf16.gmra.mxu0 %v385
        %v430 = vpop.f32.mrf.mxu0
        %v431 = vadd.f32 %v326, %v430
        %v432 = vpop.f32.mrf.mxu0
        %v433 = vadd.f32 %v326, %v432
        %v434 = vpop.f32.mrf.mxu0
        %v435 = vadd.f32 %v331, %v434
        %v436 = vpop.f32.mrf.mxu0
        %v437 = vadd.f32 %v331, %v436
        %438 = vmatprep.mubr.bf16.mxu0 0
        %439 = vmatmul.mubr.bf16.gmra.mxu0 %v388
        %v440 = vpop.f32.mrf.mxu0
        %v441 = vadd.f32 %v336, %v440
        %v442 = vpop.f32.mrf.mxu0
        %v443 = vadd.f32 %v336, %v442
        %v444 = vpop.f32.mrf.mxu0
        %v445 = vadd.f32 %v341, %v444
        %v446 = vpop.f32.mrf.mxu0
        %v447 = vadd.f32 %v341, %v446
        %448 = vmatprep.mubr.bf16.mxu0 0
        %449 = vmatmul.mubr.bf16.gmra.mxu0 %v391
        %v450 = vpop.f32.mrf.mxu0
        %v451 = vadd.f32 %v346, %v450
        %v452 = vpop.f32.mrf.mxu0
        %v453 = vadd.f32 %v346, %v452
        %v454 = vpop.f32.mrf.mxu0
        %v455 = vadd.f32 %v351, %v454
        %v456 = vpop.f32.mrf.mxu0
        %v457 = vadd.f32 %v351, %v456
        %458 = vmatprep.mubr.bf16.mxu0 0
        %459 = vmatmul.mubr.bf16.gmra.mxu0 %v394
        %v460 = vpop.f32.mrf.mxu0
        %v461 = vadd.f32 %v356, %v460
        %v462 = vpop.f32.mrf.mxu0
        %v463 = vadd.f32 %v356, %v462
        %v464 = vpop.f32.mrf.mxu0
        %v465 = vadd.f32 %v361, %v464
        %v466 = vpop.f32.mrf.mxu0
        %v467 = vadd.f32 %v361, %v466
        %468 = vdwg.mxu0
        %v469 = vmax.f32 %v431, 0.0
        %v470 = vmax.f32 %v433, 0.0
        %v471 = vmax.f32 %v435, 0.0
        %v472 = vmax.f32 %v437, 0.0
        %v473 = vmax.f32 %v441, 0.0
        %v474 = vmax.f32 %v443, 0.0
        %v475 = vmax.f32 %v445, 0.0
        %v476 = vmax.f32 %v447, 0.0
        %v477 = vmax.f32 %v451, 0.0
        %v478 = vmax.f32 %v453, 0.0
        %v479 = vmax.f32 %v455, 0.0
        %v480 = vmax.f32 %v457, 0.0
        %v481 = vmax.f32 %v461, 0.0
        %v482 = vmax.f32 %v463, 0.0
        %v483 = vmax.f32 %v465, 0.0
        %v484 = vmax.f32 %v467, 0.0
        %v485 = vpack.c.bf16 %v471, %v469
        %v486 = vpack.c.bf16 %v472, %v470
        %v487 = vpack.c.bf16 %v475, %v473
        %v488 = vpack.c.bf16 %v476, %v474
        %v489 = vpack.c.bf16 %v479, %v477
        %v490 = vpack.c.bf16 %v480, %v478
        %v491 = vpack.c.bf16 %v483, %v481
        %v492 = vpack.c.bf16 %v484, %v482
        %v493 = vld [vmem:[%s2] sm:$0xf]
        %v494 = vld [vmem:[%s2 + $0x4] sm:$0xf]
        %v495 = vld [vmem:[%s2 + $0x8] sm:$0xf]
        %v496 = vld [vmem:[%s2 + $0xc] sm:$0xf]
        %498 = vset.pattern.permute.xlu0 0
        %499 = vperm.xlu0 %498, %v208
        %v500 = vpop.permute.xlu0 %499
        %503 = vset.pattern.permute.xlu0 0
        %504 = vperm.xlu0 %503, %v209
        %v505 = vpop.permute.xlu0 %504
        %508 = vset.pattern.permute.xlu0 0
        %509 = vperm.xlu0 %508, %v210
        %v510 = vpop.permute.xlu0 %509
        %513 = vset.pattern.permute.xlu0 0
        %514 = vperm.xlu0 %513, %v211
        %v515 = vpop.permute.xlu0 %514
        %v521 = vunpack.c.l.b16 %v493
        %v522 = vunpack.c.l.b16 %v494
        %v523 = vunpack.c.l.b16 %v495
        %v524 = vunpack.c.l.b16 %v496
        %v525 = vpack.c.b16 %v522, %v521
        %v526 = vpack.c.b16 %v524, %v523
        %vm527 = vcmask 523264
        %v529 = vsel %vm527, %v525, 0
        %v532 = vsel %vm527, %v526, 0
        %534 = vmatprep.subr.bf16.mxu0 0
        %535 = vmatpush1.bf16.msra.mxu0 0
        %536 = vmatprep.subr.bf16.mxu0 0
        %537 = vmatpush1.bf16.msra.mxu0 0
        %538 = vmatprep.subr.bf16.mxu0 0
        %539 = vmatpush1.bf16.msra.mxu0 0
        %540 = vmatprep.subr.bf16.mxu0 0
        %541 = vmatpush1.bf16.msra.mxu0 0
        %542 = vmatprep.subr.bf16.mxu0 %v492
        %543 = vmatpush1.bf16.msra.mxu0 %v491
        %544 = vmatprep.subr.bf16.mxu0 %v490
        %545 = vmatpush1.bf16.msra.mxu0 %v489
        %546 = vmatprep.subr.bf16.mxu0 %v488
        %547 = vmatpush1.bf16.msra.mxu0 %v487
        %548 = vmatprep.subr.bf16.mxu0 %v486
        %549 = vmatpush1.bf16.msra.mxu0 %v485
        %550 = vmatprep.subr.bf16.mxu0 0
        %551 = vmatpush2.bf16.msra.mxu0 0
        %552 = vmatprep.subr.bf16.mxu0 0
        %553 = vmatpush2.bf16.msra.mxu0 0
        %554 = vmatprep.subr.bf16.mxu0 0
        %555 = vmatpush2.bf16.msra.mxu0 0
        %556 = vmatprep.subr.bf16.mxu0 0
        %557 = vmatpush2.bf16.msra.mxu0 0
        %558 = vmatprep.subr.bf16.mxu0 0
        %559 = vmatpush2.bf16.msra.mxu0 0
        %560 = vmatprep.subr.bf16.mxu0 0
        %561 = vmatpush2.bf16.msra.mxu0 0
        %562 = vmatprep.subr.bf16.mxu0 0
        %563 = vmatpush2.bf16.msra.mxu0 0
        %564 = vmatprep.subr.bf16.mxu0 0
        %565 = vmatpush2.bf16.msra.mxu0 0
        %566 = vmatprep.mubr.bf16.mxu0 0
        %567 = vmatmul.mubr.bf16.gmra.mxu0 %v529
        %v568 = vpop.f32.mrf.mxu0
        %v569 = vadd.f32 %v500, %v568
        %v570 = vpop.f32.mrf.mxu0
        %v571 = vadd.f32 %v500, %v570
        %v572 = vpop.f32.mrf.mxu0
        %v573 = vadd.f32 %v505, %v572
        %v574 = vpop.f32.mrf.mxu0
        %v575 = vadd.f32 %v505, %v574
        %576 = vmatprep.mubr.bf16.mxu0 0
        %577 = vmatmul.mubr.bf16.gmra.mxu0 %v532
        %v578 = vpop.f32.mrf.mxu0
        %v579 = vadd.f32 %v510, %v578
        %v580 = vpop.f32.mrf.mxu0
        %v581 = vadd.f32 %v510, %v580
        %v582 = vpop.f32.mrf.mxu0
        %v583 = vadd.f32 %v515, %v582
        %v584 = vpop.f32.mrf.mxu0
        %v585 = vadd.f32 %v515, %v584
        %586 = vdwg.mxu0
        %v587 = vmax.f32 %v569, 0.0
        %v588 = vmax.f32 %v571, 0.0
        %v589 = vmax.f32 %v573, 0.0
        %v590 = vmax.f32 %v575, 0.0
        %v591 = vmax.f32 %v579, 0.0
        %v592 = vmax.f32 %v581, 0.0
        %v593 = vmax.f32 %v583, 0.0
        %v594 = vmax.f32 %v585, 0.0
        %596 = vset.pattern.permute.xlu0 0
        %597 = vperm.xlu0 %596, %v212
        %v598 = vpop.permute.xlu0 %597
        %601 = vset.pattern.permute.xlu0 0
        %602 = vperm.xlu0 %601, %v213
        %v603 = vpop.permute.xlu0 %602
        %606 = vset.pattern.permute.xlu0 0
        %607 = vperm.xlu0 %606, %v214
        %v608 = vpop.permute.xlu0 %607
        %611 = vset.pattern.permute.xlu0 0
        %612 = vperm.xlu0 %611, %v215
        %v613 = vpop.permute.xlu0 %612
        %v615 = vmul.f32 %v587, %v598
        %v616 = vmul.f32 %v588, %v598
        %v617 = vmul.f32 %v589, %v603
        %v618 = vmul.f32 %v590, %v603
        %v619 = vmul.f32 %v591, %v608
        %v620 = vmul.f32 %v592, %v608
        %v621 = vmul.f32 %v593, %v613
        %v622 = vmul.f32 %v594, %v613
        %v623 = vadd.f32 %v615, %v617
        %v624 = vadd.f32 %v623, %v619
        %v625 = vadd.f32 %v624, %v621
        %v626 = vrot.slane %v625, 4
        %v627 = vadd.f32 %v625, %v626
        %v628 = vrot.slane %v627, 2
        %v629 = vadd.f32 %v627, %v628
        %v630 = vrot.slane %v629, 1
        %v631 = vadd.f32 %v629, %v630
        %v632 = vadd.f32 %v616, %v618
        %v633 = vadd.f32 %v632, %v620
        %v634 = vadd.f32 %v633, %v622
        %v635 = vrot.slane %v634, 4
        %v636 = vadd.f32 %v634, %v635
        %v637 = vrot.slane %v636, 2
        %v638 = vadd.f32 %v636, %v637
        %v639 = vrot.slane %v638, 1
        %v640 = vadd.f32 %v638, %v639
        %642 = vset.pattern.permute.xlu0 0
        %643 = vperm.xlu0 %642, %v216
        %v644 = vpop.permute.xlu0 %643
        %v646 = vadd.f32 %v631, %v644
        %v647 = vadd.f32 %v640, %v644
        %v650 = vcombine.low %v646, %v647
        %v652 = vunpack.c.l.s4 1966171168
        %v653 = vunpack.c.0.s8 %v652
        %v654 = vlaneseq
        %v655 = vshrl.u32 %v654, 7
        %v656 = vsub.s32 %v653, %v655
        %v657 = vrot.slane %v650, %v656
        %v659 = vunpack.c.l.s4 1966171168
        %v660 = vunpack.c.0.s8 %v659
        %v661 = vlaneseq
        %v662 = vshrl.u32 %v661, 7
        %v663 = vsub.s32 %v660, %v662
        %v664 = vrot.slane %v657, %v663
        %v666 = vlaneseq
        %vm667 = vcmp.ge.s32.totalorder %v666, 0
        %vm668 = vcmp.lt.s32.totalorder %v666, 256
        %vm669 = vmand %vm667, %vm668
        %670 = vst.msk [vmem:[%s191] sm:$0x3] %vm669, %v664
        %s671 = sand.u32 %s115, 1
        %s672 = scalar_lea.sflag [#allocation3], %s671
        %s673 = sand.u32 %s115, 1
        %s674 = smul.addr %s673, 2
        %s675 = scalar_lea.vmem [#allocation2], %s674
        // Predicated region
        $region37: #{tpu_custom_call.1} parent=35 // pred_check
          %p676 = pneg %p125
        $region38: #{tpu_custom_call.1} parent=35 // pred_check_branch
          %678 = sbr.rel (%p676) target = $region40
        $region39: #{tpu_custom_call.1} parent=35 // pred_region
          %s679 = smul.u32 2, %s18
          %s681 = ssub.s32 32, 32
          %682 = vsyncadd %s672, %s681
          %s683 = smul.addr %s679, 16
          %s684 = scalar_lea.hbm %s4, %s683
          %s686 = sshll.u32 %s675, 4
          %s687 = int_to_ptr.vmem [resolvable:$true] %s686
          %689 = dma.vmem_to_hbm [thread:$0]  %s687, 32, %s684, %s672
        $region40: #{tpu_custom_call.1} parent=35 // pred_fallthru
          _
      $region36: #{tpu_custom_call.1} parent=5 // pred_fallthru
        _
      %p690 = scmp.le.s32.totalorder 2, %s13
      // Predicated region
      $region41: #{tpu_custom_call.1} parent=5 // pred_check
        %p691 = pneg %p690
      $region42: #{tpu_custom_call.1} parent=5 // pred_check_branch
        %693 = sbr.rel (%p691) target = $region44
      $region43: #{tpu_custom_call.1} parent=5 // pred_region
        %s694 = ssub.s32 %s13, 2
        // Predicated region
        $region45: #{tpu_custom_call.1} parent=43 // pred_check
          %p695 = pneg %p131
        $region46: #{tpu_custom_call.1} parent=43 // pred_check_branch
          %697 = sbr.rel (%p695) target = $region48
        $region47: #{tpu_custom_call.1} parent=43 // pred_region
          %s698 = sand.u32 %s116, 1
          %s699 = scalar_lea.sflag [#allocation3], %s698
          %s700 = sand.u32 %s116, 1
          %s701 = smul.addr %s700, 2
          %s702 = scalar_lea.vmem [#allocation2], %s701
          %703 = dma.done %s699, 32
        $region48: #{tpu_custom_call.1} parent=43 // pred_fallthru
          _
      $region44: #{tpu_custom_call.1} parent=5 // pred_fallthru
        _
    $region6: #{tpu_custom_call.1} parent=1 // loop_footer
      %s17 = sadd.s32 1, %s13
    $region7: #{tpu_custom_call.1} parent=1 // loop_footer_branch
      %12 = sbr.rel target = $region3
    $region8: #{tpu_custom_call.1} parent=1 // loop_exit
      _
    %704 = vsyncpa [#allocation3], 1
    %s705 = scalar_lea.sflag [#allocation3], 1
    %706 = vsyncpa %s705, 1

</llo_original>
